<compile_context>
chip_gen: v7x
topology: tpu7x:2x2x1
jax: 0.10.0
libtpu: 0.0.40
codegen_flags: <defaults>
</compile_context>

<pallas_src>
import functools
import math

import jax
import jax.numpy as jnp
from jax.experimental import pallas as pl
from jax.experimental.pallas import tpu as pltpu


def _default_dtypes():
    """(mxu_dtype, elementwise_dtype) defaults.

    MXU operands go bf16 on every generation (accumulation stays f32 via
    preferred_element_type).  The (TM, N) softmax/elementwise chain goes bf16
    only where the VPU/EUP are bf16-native (v6e / v7x); v5e and older keep f32.
    """
    ew = jnp.float32
    try:
        kind = jax.devices()[0].device_kind.lower()
        if not any(t in kind for t in ("v2", "v3", "v4", "v5")):
            ew = jnp.bfloat16
    except Exception:
        pass
    return jnp.bfloat16, ew


def _project_kernel(h_ref, w_ref, zaug_ref, el_ref, er_ref, *, num_heads, dout,
                    mxu_dtype):
    hm = h_ref[...].astype(mxu_dtype)
    wm = w_ref[...].astype(mxu_dtype)
    zw = jnp.dot(hm, wm, preferred_element_type=jnp.float32)   # (TM, H*Dout + 2H)
    nz = num_heads * dout
    # Lane-dense z write (single contiguous slab, no per-head 16-lane scatter)
    # plus a trailing ones column for the fused denominator.
    zaug_ref[:, :nz] = zw[:, :nz].astype(zaug_ref.dtype)
    zaug_ref[:, nz:] = jnp.ones((zw.shape[0], 1), zaug_ref.dtype)
    el_ref[...] = zw[:, nz:nz + num_heads]        # a_src . z_j  (source-half scores)
    er_ref[...] = zw[:, nz + num_heads:]          # a_dst . z_i  (dest-half scores)


def _attn_kernel(adj_ref, zaug_ref, elt_ref, er_ref, out_ref, *, num_heads,
                 dout, neg_slope, mxu_dtype, ew_dtype):
    nz = num_heads * dout
    edge = adj_ref[...] > 0                       # (TM, N): 1 iff edge j -> i
    zaug = zaug_ref[...]                          # (N, nz+1) resident, already mxu_dtype

    acc = None
    for hd in range(num_heads):                   # static unroll: fused head loop
        el = elt_ref[hd:hd + 1, :].astype(ew_dtype)      # (1, N)
        er = er_ref[:, hd:hd + 1].astype(ew_dtype)       # (TM, 1)
        # Edge logits e[i, j] = leaky_relu(a_src.z_j + a_dst.z_i) for edge j->i.
        e = er + el                                      # (TM, N)
        e = jnp.where(e > 0, e, neg_slope * e)           # leaky_relu (slope 0.01)
        # Masked softmax over incoming edges.  exp(e - max) underflows to exactly
        # 0 at the -1e30 entries.  (Rows with zero in-degree become uniform
        # attention instead of NaN; the torch reference NaNs there -- self-loops
        # make this moot in practice.)
        e = jnp.where(edge, e, -1e30)
        p = jnp.exp(e - jnp.max(e, axis=-1, keepdims=True))   # (TM, N)
        # p @ [z | 1]: per-head aggregate *and* softmax denominator in one MXU
        # pass (no XLU row-sum).  MXU output width H*Dout+1 << 128 lanes, so the
        # full-z matmul is as cheap as a per-head slice.
        # TODO(synk): for H*Dout >> 128, slice z per head before the dot instead.
        res = jnp.dot(p.astype(mxu_dtype), zaug,
                      preferred_element_type=jnp.float32)      # (TM, nz+1)
        denom = res[:, nz:]                                    # (TM, 1) = sum_j p
        # Deferred normalization: EUP reciprocal + one Newton step (~f32-exact),
        # applied after the matmul so it costs TM*Dout muls, not TM*N divides.
        r = pl.reciprocal(denom, approx=True)
        r = r * (2.0 - denom * r)
        contrib = res[:, hd * dout:(hd + 1) * dout] * (r * (1.0 / num_heads))
        acc = contrib if acc is None else acc + contrib

    out_ref[...] = jnp.where(acc > 0, acc, jnp.expm1(acc))     # F.elu (alpha=1)


def gat_layer(h, adj_i8, w, a, *, tm=None, mxu_dtype=jnp.bfloat16,
              ew_dtype=jnp.float32):
    """One MultiHeadGATLayer (+ trailing ELU) on a dense int8 adjacency mask."""
    num_heads, din, dout = w.shape
    n = h.shape[0]
    nz = num_heads * dout
    if tm is None:
        # TM=128 matches the v5e MXU M-side and keeps the (TM, N) softmax
        # temporaries inside the 16/32 MiB default scoped VMEM on v5e / v7x.
        tm = n if n <= 128 else 128
    if tm != n:
        # int8 adjacency strips want sublane tiles of 32.
        assert n % tm == 0 and tm % 32 == 0, (n, tm)
        # TODO(synk): pad/mask ragged node counts instead of asserting.
    row_tiles = n // tm

    # ---- projection: z, el, er for all heads in one wide matmul ----
    w_wide = jnp.transpose(w, (1, 0, 2)).reshape(din, nz)        # (Din, H*Dout)
    w_src = jnp.einsum('hio,ho->ih', w, a[:, 0, :])              # (Din, H) = W_h @ a_src_h
    w_dst = jnp.einsum('hio,ho->ih', w, a[:, 1, :])              # (Din, H) = W_h @ a_dst_h
    w_total = jnp.concatenate([w_wide, w_src, w_dst], axis=1)    # (Din, H*Dout + 2H)

    proj = functools.partial(_project_kernel, num_heads=num_heads, dout=dout,
                             mxu_dtype=mxu_dtype)
    zaug, el, er = pl.pallas_call(
        proj,
        out_shape=(
            jax.ShapeDtypeStruct((n, nz + 1), mxu_dtype),        # [z | 1]
            jax.ShapeDtypeStruct((n, num_heads), jnp.float32),   # el (source scores)
            jax.ShapeDtypeStruct((n, num_heads), jnp.float32),   # er (dest scores)
        ),
        grid_spec=pltpu.PrefetchScalarGridSpec(
            num_scalar_prefetch=0,
            grid=(row_tiles,),
            in_specs=[
                pl.BlockSpec((tm, din), lambda i: (i, 0)),
                pl.BlockSpec((din, nz + 2 * num_heads), lambda i: (0, 0)),
            ],
            out_specs=(
                pl.BlockSpec((tm, nz + 1), lambda i: (i, 0)),
                pl.BlockSpec((tm, num_heads), lambda i: (i, 0)),
                pl.BlockSpec((tm, num_heads), lambda i: (i, 0)),
            ),
        ),
        compiler_params=pltpu.CompilerParams(dimension_semantics=("parallel",)),
    )(h, w_total)

    # Tiny one-off XLA transpose so the attention kernel sees a_src scores as a
    # lane-major (H, N) row per head (no per-step (N,1)->(1,N) XLU transpose).
    el_t = el.T

    # ---- attention + aggregation + head mean + ELU ----
    attn = functools.partial(_attn_kernel, num_heads=num_heads, dout=dout,
                             neg_slope=0.01, mxu_dtype=mxu_dtype,
                             ew_dtype=ew_dtype)
    ew_bytes = jnp.dtype(ew_dtype).itemsize
    mxu_bytes = jnp.dtype(mxu_dtype).itemsize
    # VMEM budget: the (TM, N) e/p temporaries (not the int8 strip) dominate.
    vmem_need = (2 * tm * n                           # adj strips, double-buffered
                 + 2 * n * (nz + 1) * mxu_bytes       # resident z_aug (+ layout slack)
                 + 2 * num_heads * n * 4              # resident el_t
                 + 4 * tm * num_heads * 4             # er tiles
                 + 4 * tm * (nz + dout) * 4           # matmul results / output
                 + 6 * tm * n * ew_bytes)             # e / p temporaries + spill slack
    # 64 MiB cap is v7x-physical-safe; on v5e/v6e it may be raised toward
    # 128 MiB for larger N before the flash-style column tiling is required.
    vmem_limit = int(min(64 << 20, max(32 << 20, 2 * vmem_need)))
    cost = pl.CostEstimate(
        flops=int(2 * num_heads * n * n * (nz + 1) + 8 * num_heads * n * n),
        transcendentals=int(num_heads * n * n),
        bytes_accessed=int(n * n                        # int8 adj, one pass
                           + n * (nz + 1) * mxu_bytes   # z_aug read once (resident)
                           + 2 * num_heads * n * 4      # el / er
                           + n * dout * 4),             # output
    )
    out = pl.pallas_call(
        attn,
        out_shape=jax.ShapeDtypeStruct((n, dout), jnp.float32),
        grid_spec=pltpu.PrefetchScalarGridSpec(
            num_scalar_prefetch=0,
            grid=(row_tiles,),
            in_specs=[
                pl.BlockSpec((tm, n), lambda i: (i, 0)),              # adj strip
                pl.BlockSpec((n, nz + 1), lambda i: (0, 0)),          # z_aug, resident
                pl.BlockSpec((num_heads, n), lambda i: (0, 0)),       # el_t, resident
                pl.BlockSpec((tm, num_heads), lambda i: (i, 0)),      # er, this tile's rows
            ],
            out_specs=pl.BlockSpec((tm, dout), lambda i: (i, 0)),
        ),
        compiler_params=pltpu.CompilerParams(
            # On v7x, switch this axis to pltpu.CORE_PARALLEL if the trace shows
            # only one TensorCore busy (requires row_tiles >= 2).
            dimension_semantics=("parallel",),
            vmem_limit_bytes=vmem_limit),
        cost_estimate=cost,
    )(adj_i8, zaug, el_t, er)
    # TODO(synk): for N large enough that the (TM, N) strips / temporaries no
    # longer fit VMEM (N ~ 8-16k at TM=128 depending on generation), add a
    # source-column tile axis with an online (flash-style) softmax.
    return out


# ---------------- parameter construction (deterministic, torch-like init) ----------------

def _xavier_normal(key, out_f, in_f, gain):
    std = gain * math.sqrt(2.0 / (in_f + out_f))
    return std * jax.random.normal(key, (out_f, in_f), dtype=jnp.float32)


def make_gat_params(key, num_layers, in_dim, hidden_dim, out_dim, num_heads):
    gain = math.sqrt(2.0)  # nn.init.calculate_gain('relu')
    cfgs = [(in_dim, hidden_dim, num_heads)]
    for _ in range(num_layers - 2):
        cfgs.append((hidden_dim, hidden_dim, num_heads))
    cfgs.append((hidden_dim, out_dim, 1))

    params = []
    for (din, dout, heads) in cfgs:
        ws, attns = [], []
        for _ in range(heads):
            key, k1, k2 = jax.random.split(key, 3)
            w = _xavier_normal(k1, dout, din, gain)           # torch fc.weight (out, in)
            ws.append(w.T)                                    # kernel wants (in, out)
            aw = _xavier_normal(k2, 1, 2 * dout, gain)[0]     # torch attn_fc.weight (1, 2*out)
            attns.append(jnp.stack([aw[:dout], aw[dout:]]))   # (2, out): [a_src, a_dst]
        params.append((jnp.stack(ws), jnp.stack(attns)))      # (H, din, dout), (H, 2, dout)
    return params


def gat_forward(feat, adj, params, *, tm=None, mxu_dtype=None, ew_dtype=None):
    d_mxu, d_ew = _default_dtypes()
    mxu_dtype = d_mxu if mxu_dtype is None else mxu_dtype
    ew_dtype = d_ew if ew_dtype is None else ew_dtype
    adj_i8 = (adj > 0).astype(jnp.int8)        # 4x smaller adjacency byte stream
    h = feat
    for (w, a) in params:
        h = gat_layer(h, adj_i8, w, a, tm=tm, mxu_dtype=mxu_dtype,
                      ew_dtype=ew_dtype)
    return h


# ---------------- pure-JAX reference for a sanity check ----------------

def gat_forward_ref(feat, adj, params):
    h = feat
    for (w, a) in params:
        outs = []
        for hd in range(w.shape[0]):
            z = h @ w[hd]
            el = z @ a[hd, 0]
            er = z @ a[hd, 1]
            e = er[:, None] + el[None, :]
            e = jnp.where(e > 0, e, 0.01 * e)
            e = jnp.where(adj > 0, e, -jnp.inf)
            alpha = jax.nn.softmax(e, axis=-1)
            outs.append(alpha @ z)
        m = jnp.mean(jnp.stack(outs), axis=0)
        h = jnp.where(m > 0, m, jnp.expm1(m))
    return h


if __name__ == "__main__":
    N, in_dim, hidden_dim, out_dim = 64, 16, 16, 8
    num_layers, num_heads = 3, 2
    TM = 32   # 2 row tiles per layer (exercises tiling + the resident z block)

    key = jax.random.PRNGKey(0)
    kfeat, kparam = jax.random.split(key)

    feat = jax.random.normal(kfeat, (N, in_dim), dtype=jnp.float32)

    # small deterministic graph: self-loops + two ring-style in-edges per node
    idx = jnp.arange(N)
    adj = jnp.zeros((N, N), dtype=jnp.float32)
    adj = adj.at[idx, idx].set(1.0)
    adj = adj.at[idx, (idx + 1) % N].set(1.0)
    adj = adj.at[idx, (idx + 3) % N].set(1.0)

    params = make_gat_params(kparam, num_layers, in_dim, hidden_dim, out_dim, num_heads)
    ref = gat_forward_ref(feat, adj, params)

    # 1) Strict correctness gate: f32 MXU operands, f32 softmax chain.
    out_f32 = jax.block_until_ready(
        gat_forward(feat, adj, params, tm=TM,
                    mxu_dtype=jnp.float32, ew_dtype=jnp.float32))
    assert out_f32.shape == (N, out_dim)
    assert jnp.allclose(out_f32, ref, atol=2e-3, rtol=2e-3), \
        float(jnp.max(jnp.abs(out_f32 - ref)))

    # 2) Performance path: bf16 MXU operands (+ bf16 softmax chain on v6e/v7x).
    #    bf16 compounded over 3 attention layers -> loose sanity bound only.
    out_fast = jax.block_until_ready(gat_forward(feat, adj, params, tm=TM))
    assert out_fast.shape == (N, out_dim)
    assert bool(jnp.all(jnp.isfinite(out_fast)))
    assert jnp.allclose(out_fast, ref, atol=2.5e-1, rtol=1e-1), \
        float(jnp.max(jnp.abs(out_fast - ref)))

    print("KERNEL_OK")
</pallas_src>

<mosaic_0001>
module attributes {stable_mosaic.version = 11 : i64} {
  func.func @_project_kernel(%arg0: i32, %arg1: memref<32x16xf32, #tpu.memory_space<vmem>>, %arg2: memref<16x36xf32, #tpu.memory_space<vmem>>, %arg3: memref<32x33xf32, #tpu.memory_space<vmem>>, %arg4: memref<32x2xf32, #tpu.memory_space<vmem>>, %arg5: memref<32x2xf32, #tpu.memory_space<vmem>>) attributes {dimension_semantics = [#tpu.dimension_semantics<parallel>], iteration_bounds = array<i64: 2>, scalar_prefetch = 0 : i64, scratch_operands = 0 : i64, tpu.core_type = #tpu.core_type<tc>, window_params = [{transform_indices = @transform_0, window_bounds = array<i64: 32, 16>}, {pipeline_mode = #tpu.pipeline_mode<synchronous>, transform_indices = @transform_1, window_bounds = array<i64: 16, 36>}, {transform_indices = @transform_2, window_bounds = array<i64: 32, 33>}, {transform_indices = @transform_3, window_bounds = array<i64: 32, 2>}, {transform_indices = @transform_4, window_bounds = array<i64: 32, 2>}]} {
    %c0 = arith.constant 0 : index
    %c0_0 = arith.constant 0 : index
    %0 = vector.load %arg1[%c0, %c0_0] : memref<32x16xf32, #tpu.memory_space<vmem>>, vector<32x16xf32>
    %c0_1 = arith.constant 0 : index
    %c0_2 = arith.constant 0 : index
    %1 = vector.load %arg2[%c0_1, %c0_2] : memref<16x36xf32, #tpu.memory_space<vmem>>, vector<16x36xf32>
    %cst = arith.constant dense<0.000000e+00> : vector<32x36xf32>
    %2 = tpu.matmul %0, %1, %cst {dimension_numbers = #tpu.dot_dimension_numbers<[1], [0], [0], [1], [0, 0, 1, 1], [], []>} : vector<32x16xf32>, vector<16x36xf32>, vector<32x36xf32> -> vector<32x36xf32>
    %3 = vector.extract_strided_slice %2 {offsets = [0, 0], sizes = [32, 32], strides = [1, 1]} : vector<32x36xf32> to vector<32x32xf32>
    %c0_3 = arith.constant 0 : index
    %c0_4 = arith.constant 0 : index
    %4 = vector.load %arg3[%c0_3, %c0_4] : memref<32x33xf32, #tpu.memory_space<vmem>>, vector<32x32xf32>
    tpu.vector_store %arg3[%c0_3, %c0_4], %3 {strides = array<i32>} : memref<32x33xf32, #tpu.memory_space<vmem>>, vector<32x32xf32>,
    %cst_5 = arith.constant 1.000000e+00 : f32
    %5 = vector.broadcast %cst_5 : f32 to vector<32x1xf32>
    %c0_6 = arith.constant 0 : index
    %c32 = arith.constant 32 : index
    %6 = vector.load %arg3[%c0_6, %c32] : memref<32x33xf32, #tpu.memory_space<vmem>>, vector<32x1xf32>
    tpu.vector_store %arg3[%c0_6, %c32], %5 {strides = array<i32>} : memref<32x33xf32, #tpu.memory_space<vmem>>, vector<32x1xf32>,
    %7 = vector.extract_strided_slice %2 {offsets = [0, 32], sizes = [32, 2], strides = [1, 1]} : vector<32x36xf32> to vector<32x2xf32>
    %c0_7 = arith.constant 0 : index
    %c0_8 = arith.constant 0 : index
    %8 = vector.load %arg4[%c0_7, %c0_8] : memref<32x2xf32, #tpu.memory_space<vmem>>, vector<32x2xf32>
    tpu.vector_store %arg4[%c0_7, %c0_8], %7 {strides = array<i32>} : memref<32x2xf32, #tpu.memory_space<vmem>>, vector<32x2xf32>,
    %9 = vector.extract_strided_slice %2 {offsets = [0, 34], sizes = [32, 2], strides = [1, 1]} : vector<32x36xf32> to vector<32x2xf32>
    %c0_9 = arith.constant 0 : index
    %c0_10 = arith.constant 0 : index
    %10 = vector.load %arg5[%c0_9, %c0_10] : memref<32x2xf32, #tpu.memory_space<vmem>>, vector<32x2xf32>
    tpu.vector_store %arg5[%c0_9, %c0_10], %9 {strides = array<i32>} : memref<32x2xf32, #tpu.memory_space<vmem>>, vector<32x2xf32>,
    return
  }
  func.func @transform_0(%arg0: i32) -> (i32, i32) {
    %c0_i32 = arith.constant 0 : i32
    %c0_i32_0 = arith.constant 0 : i32
    return %arg0, %c0_i32 : i32, i32
  }
  func.func @transform_1(%arg0: i32) -> (i32, i32) {
    %c0_i32 = arith.constant 0 : i32
    %c0_i32_0 = arith.constant 0 : i32
    %c0_i32_1 = arith.constant 0 : i32
    return %c0_i32, %c0_i32_0 : i32, i32
  }
  func.func @transform_2(%arg0: i32) -> (i32, i32) {
    %c0_i32 = arith.constant 0 : i32
    %c0_i32_0 = arith.constant 0 : i32
    return %arg0, %c0_i32 : i32, i32
  }
  func.func @transform_3(%arg0: i32) -> (i32, i32) {
    %c0_i32 = arith.constant 0 : i32
    %c0_i32_0 = arith.constant 0 : i32
    return %arg0, %c0_i32 : i32, i32
  }
  func.func @transform_4(%arg0: i32) -> (i32, i32) {
    %c0_i32 = arith.constant 0 : i32
    %c0_i32_0 = arith.constant 0 : i32
    return %arg0, %c0_i32 : i32, i32
  }
}

</mosaic_0001>

<llo_original>
// kernel: tpu_custom_call.1
$region0: #{tpu_custom_call.1}
  #allocation0 [shape = 'u32[]', space=smem, size = 0x4, offset = 0x4, fixed_abs, tag = 'smem constant byte address 0x4 - core index']
  #allocation1 [shape = 'u32[144,128]{1,0:T(1,128)}', space=vmem, size = 0x12000, scoped, tag = 'internal scratch']
  %s0 = inlined_call_operand.vmem [shape: f32[64,16], index: 0, kind: input, shape index: {}]
  %s1 = inlined_call_operand.vmem [shape: f32[16,36], index: 1, kind: input, shape index: {}]
  %s2 = inlined_call_operand.vmem [shape: f32[64,33], index: 2, kind: output, shape index: {0}]
  %s3 = inlined_call_operand.vmem [shape: f32[64,2], index: 3, kind: output, shape index: {1}]
  %s4 = inlined_call_operand.vmem [shape: f32[64,2], index: 4, kind: output, shape index: {2}]
  %5 = xla_tuple %s2, %s3, %s4
  %s6 = sld [smem:[#allocation0]]
  $region57: #{tpu_custom_call.1} parent=0
    _
  %s8 = ssub.s32 1, %s6
  %s9 = scalar_select 0, %s8, %s6
  loop: start=0, step=1, limit=4
  $region2: #{tpu_custom_call.1} parent=0 // loop_pre_header
    _
  $region3: #{tpu_custom_call.1} parent=0 // loop_header
    %s11 = sphi 0, %s15
    %p12 = scmp.ge.s32.totalorder %s11, 4
    %s21 = sphi 0, %s23
    %s24 = sphi 0, %s21
    %s25 = sphi 0, %s24
    %s41 = sphi 0, %s25
    %s45 = sphi 0, %s45
    %s47 = sphi 0, %s45
    %s48 = sphi 0, %s47
    %s62 = sphi 0, %s48
    %s68 = sphi 0, %s70
    %s71 = sphi 0, %s68
    %s72 = sphi 0, %s71
    %s88 = sphi 0, %s72
    %s94 = sphi 0, %s96
    %s97 = sphi 0, %s94
    %s98 = sphi 0, %s97
    %s114 = sphi 0, %s98
    %s120 = sphi 0, %s122
    %s123 = sphi 0, %s120
    %s124 = sphi 0, %s123
    %s140 = sphi 0, %s124
  $region4: #{tpu_custom_call.1} parent=0 // loop_header_branch
    %14 = sbr.rel (%p12) target = $region8
  $region5: #{tpu_custom_call.1} parent=0 // loop_body
    %s16 = ssub.s32 %s11, 1
    %s17 = ssub.s32 %s11, 2
    %s18 = sadd.s32 %s11, 1
    %s19 = ssub.s32 %s11, %s18
    %p20 = scmp.eq.s32.totalorder %s19, 0
    %s22 = sadd.s32 %s21, 1
    %s23 = scalar_select %p20, %s21, %s22
    %p26 = pneg %p20
    %p27 = scmp.eq.s32.totalorder %s11, 1
    %p28 = por %p26, %p27
    %p29 = scmp.ne.s32.totalorder %s21, %s24
    %p30 = scmp.eq.s32.totalorder %s11, 0
    %p31 = por %p29, %p30
    %p32 = scmp.ne.s32.totalorder %s21, %s24
    %p33 = scmp.eq.s32.totalorder %s16, 1
    %p34 = por %p32, %p33
    %p35 = scmp.ne.s32.totalorder %s24, %s25
    %p36 = scmp.eq.s32.totalorder %s16, 0
    %p37 = por %p35, %p36
    %p38 = scmp.ne.s32.totalorder %s24, %s25
    %p39 = scmp.eq.s32.totalorder %s17, 1
    %p40 = por %p38, %p39
    %p42 = scmp.ne.s32.totalorder %s25, %s41
    %p43 = scmp.eq.s32.totalorder %s17, 0
    %p44 = por %p42, %p43
    %s46 = sadd.s32 %s45, 1
    %p49 = scmp.eq.s32.totalorder %s11, 1
    %p50 = scmp.ne.s32.totalorder %s45, %s47
    %p51 = scmp.eq.s32.totalorder %s11, 0
    %p52 = por %p50, %p51
    %p53 = scmp.ne.s32.totalorder %s45, %s47
    %p54 = scmp.eq.s32.totalorder %s16, 1
    %p55 = por %p53, %p54
    %p56 = scmp.ne.s32.totalorder %s47, %s48
    %p57 = scmp.eq.s32.totalorder %s16, 0
    %p58 = por %p56, %p57
    %p59 = scmp.ne.s32.totalorder %s47, %s48
    %p60 = scmp.eq.s32.totalorder %s17, 1
    %p61 = por %p59, %p60
    %p63 = scmp.ne.s32.totalorder %s48, %s62
    %p64 = scmp.eq.s32.totalorder %s17, 0
    %p65 = por %p63, %p64
    %s66 = ssub.s32 %s11, %s18
    %p67 = scmp.eq.s32.totalorder %s66, 0
    %s69 = sadd.s32 %s68, 1
    %s70 = scalar_select %p67, %s68, %s69
    %p73 = pneg %p67
    %p74 = scmp.eq.s32.totalorder %s11, 1
    %p75 = por %p73, %p74
    %p76 = scmp.ne.s32.totalorder %s68, %s71
    %p77 = scmp.eq.s32.totalorder %s11, 0
    %p78 = por %p76, %p77
    %p79 = scmp.ne.s32.totalorder %s68, %s71
    %p80 = scmp.eq.s32.totalorder %s16, 1
    %p81 = por %p79, %p80
    %p82 = scmp.ne.s32.totalorder %s71, %s72
    %p83 = scmp.eq.s32.totalorder %s16, 0
    %p84 = por %p82, %p83
    %p85 = scmp.ne.s32.totalorder %s71, %s72
    %p86 = scmp.eq.s32.totalorder %s17, 1
    %p87 = por %p85, %p86
    %p89 = scmp.ne.s32.totalorder %s72, %s88
    %p90 = scmp.eq.s32.totalorder %s17, 0
    %p91 = por %p89, %p90
    %s92 = ssub.s32 %s11, %s18
    %p93 = scmp.eq.s32.totalorder %s92, 0
    %s95 = sadd.s32 %s94, 1
    %s96 = scalar_select %p93, %s94, %s95
    %p99 = pneg %p93
    %p100 = scmp.eq.s32.totalorder %s11, 1
    %p101 = por %p99, %p100
    %p102 = scmp.ne.s32.totalorder %s94, %s97
    %p103 = scmp.eq.s32.totalorder %s11, 0
    %p104 = por %p102, %p103
    %p105 = scmp.ne.s32.totalorder %s94, %s97
    %p106 = scmp.eq.s32.totalorder %s16, 1
    %p107 = por %p105, %p106
    %p108 = scmp.ne.s32.totalorder %s97, %s98
    %p109 = scmp.eq.s32.totalorder %s16, 0
    %p110 = por %p108, %p109
    %p111 = scmp.ne.s32.totalorder %s97, %s98
    %p112 = scmp.eq.s32.totalorder %s17, 1
    %p113 = por %p111, %p112
    %p115 = scmp.ne.s32.totalorder %s98, %s114
    %p116 = scmp.eq.s32.totalorder %s17, 0
    %p117 = por %p115, %p116
    %s118 = ssub.s32 %s11, %s18
    %p119 = scmp.eq.s32.totalorder %s118, 0
    %s121 = sadd.s32 %s120, 1
    %s122 = scalar_select %p119, %s120, %s121
    %p125 = pneg %p119
    %p126 = scmp.eq.s32.totalorder %s11, 1
    %p127 = por %p125, %p126
    %p128 = scmp.ne.s32.totalorder %s120, %s123
    %p129 = scmp.eq.s32.totalorder %s11, 0
    %p130 = por %p128, %p129
    %p131 = scmp.ne.s32.totalorder %s120, %s123
    %p132 = scmp.eq.s32.totalorder %s16, 1
    %p133 = por %p131, %p132
    %p134 = scmp.ne.s32.totalorder %s123, %s124
    %p135 = scmp.eq.s32.totalorder %s16, 0
    %p136 = por %p134, %p135
    %p137 = scmp.ne.s32.totalorder %s123, %s124
    %p138 = scmp.eq.s32.totalorder %s17, 1
    %p139 = por %p137, %p138
    %p141 = scmp.ne.s32.totalorder %s124, %s140
    %p142 = scmp.eq.s32.totalorder %s17, 0
    %p143 = por %p141, %p142
    %p144 = scmp.le.s32.totalorder 1, %s11
    %p145 = scmp.lt.s32.totalorder %s11, 3
    %p146 = pnand %p144, %p145
    %p147 = pneg %p146
    // Predicated region
    $region9: #{tpu_custom_call.1} parent=5 // pred_check
      _
    $region10: #{tpu_custom_call.1} parent=5 // pred_check_branch
      %149 = sbr.rel (%p146) target = $region12
    $region11: #{tpu_custom_call.1} parent=5 // pred_region
      %s150 = ssub.s32 %s11, 1
      // Predicated region
      $region13: #{tpu_custom_call.1} parent=11 // pred_check
        %p151 = pneg %p58
      $region14: #{tpu_custom_call.1} parent=11 // pred_check_branch
        %153 = sbr.rel (%p151) target = $region16
      $region15: #{tpu_custom_call.1} parent=11 // pred_region
        _
      $region16: #{tpu_custom_call.1} parent=11 // pred_fallthru
        _
    $region12: #{tpu_custom_call.1} parent=5 // pred_fallthru
      _
    %p154 = scmp.lt.s32.totalorder %s11, 2
    // Predicated region
    $region17: #{tpu_custom_call.1} parent=5 // pred_check
      %p155 = pneg %p154
    $region18: #{tpu_custom_call.1} parent=5 // pred_check_branch
      %157 = sbr.rel (%p155) target = $region20
    $region19: #{tpu_custom_call.1} parent=5 // pred_region
      // Predicated region
      $region21: #{tpu_custom_call.1} parent=19 // pred_check
        %p158 = pneg %p31
      $region22: #{tpu_custom_call.1} parent=19 // pred_check_branch
        %160 = sbr.rel (%p158) target = $region24
      $region23: #{tpu_custom_call.1} parent=19 // pred_region
        %s161 = smul.u32 4, %s11
        %p162 = scmp.lt.s32.totalorder %s161, 7
        %s163 = scalar_select %p162, %s161, 7
        %s164 = smul.addr %s163, 8
        %s165 = scalar_lea.vmem %s0, %s164
        %s166 = smul.u32 4, %s11
      $region24: #{tpu_custom_call.1} parent=19 // pred_fallthru
        _
    $region20: #{tpu_custom_call.1} parent=5 // pred_fallthru
      _
    %p167 = scmp.le.s32.totalorder 1, %s11
    %p168 = scmp.lt.s32.totalorder %s11, 3
    %p169 = pnand %p167, %p168
    %p170 = pneg %p169
    // Predicated region
    $region25: #{tpu_custom_call.1} parent=5 // pred_check
      _
    $region26: #{tpu_custom_call.1} parent=5 // pred_check_branch
      %172 = sbr.rel (%p169) target = $region28
    $region27: #{tpu_custom_call.1} parent=5 // pred_region
      %s173 = ssub.s32 %s11, 1
      %s174 = smul.u32 4, %s16
      %p175 = scmp.lt.s32.totalorder %s174, 7
      %s176 = scalar_select %p175, %s174, 7
      %s177 = smul.addr %s176, 8
      %s178 = scalar_lea.vmem %s0, %s177
      %p179 = pneg %p37
      %p180 = pneg %p34
      %p181 = pneg %p58
      %p182 = pneg %p55
      %p183 = pneg %p84
      %p184 = pneg %p81
      %s185 = smul.u32 4, %s16
      %p186 = scmp.lt.s32.totalorder %s185, 7
      %s187 = scalar_select %p186, %s185, 7
      %s188 = smul.addr %s187, 8
      %s189 = scalar_lea.vmem %s2, %s188
      %p190 = pneg %p110
      %p191 = pneg %p107
      %s192 = smul.u32 4, %s16
      %p193 = scmp.lt.s32.totalorder %s192, 7
      %s194 = scalar_select %p193, %s192, 7
      %s195 = smul.addr %s194, 8
      %s196 = scalar_lea.vmem %s3, %s195
      %p197 = pneg %p136
      %p198 = pneg %p133
      %s199 = smul.u32 4, %s16
      %p200 = scmp.lt.s32.totalorder %s199, 7
      %s201 = scalar_select %p200, %s199, 7
      %s202 = smul.addr %s201, 8
      %s203 = scalar_lea.vmem %s4, %s202
      %s204 = smul.u32 4, %s16
      %p205 = scmp.lt.s32.totalorder %s204, 7
      %s206 = scalar_select %p205, %s204, 7
      %s207 = smul.addr %s206, 8
      %s208 = scalar_lea.vmem %s0, %s207
      %s209 = smul.u32 4, %s16
      %s210 = smul.u32 4, %s16
      %p211 = scmp.lt.s32.totalorder %s210, 7
      %s212 = scalar_select %p211, %s210, 7
      %s213 = smul.addr %s212, 8
      %s214 = scalar_lea.vmem %s2, %s213
      %s215 = smul.u32 4, %s16
      %s216 = smul.u32 4, %s16
      %p217 = scmp.lt.s32.totalorder %s216, 7
      %s218 = scalar_select %p217, %s216, 7
      %s219 = smul.addr %s218, 8
      %s220 = scalar_lea.vmem %s3, %s219
      %s221 = smul.u32 4, %s16
      %s222 = smul.u32 4, %s16
      %p223 = scmp.lt.s32.totalorder %s222, 7
      %s224 = scalar_select %p223, %s222, 7
      %s225 = smul.addr %s224, 8
      %s226 = scalar_lea.vmem %s4, %s225
      %s227 = smul.u32 4, %s16
      %v228 = vld [vmem:[%s208] sm:$0xff]
      %v229 = vld [vmem:[%s208 + $0x8] sm:$0xff]
      %v230 = vld [vmem:[%s208 + $0x10] sm:$0xff]
      %v231 = vld [vmem:[%s208 + $0x18] sm:$0xff]
      %v232 = vld [vmem:[%s1] sm:$0xff]
      %v233 = vld [vmem:[%s1 + $0x8] sm:$0xff]
      %vm234 = vcmask 130048
      %v236 = vsel %vm234, %v228, 0
      %v239 = vsel %vm234, %v229, 0
      %v242 = vsel %vm234, %v230, 0
      %v245 = vsel %vm234, %v231, 0
      %247 = vmatprep.subr.mxu0 0.0
      %248 = vmatpush1.msra.mxu0 %v232
      %249 = vmatprep.subr.mxu0 0.0
      %250 = vmatpush1.msra.mxu0 %v233
      %251 = vmatprep.subr.mxu0 0.0
      %252 = vmatpush1.msra.mxu0 0.0
      %253 = vmatprep.subr.mxu0 0.0
      %254 = vmatpush1.msra.mxu0 0.0
      %255 = vmatprep.subr.mxu0 0.0
      %256 = vmatpush1.msra.mxu0 0.0
      %257 = vmatprep.subr.mxu0 0.0
      %258 = vmatpush1.msra.mxu0 0.0
      %259 = vmatprep.subr.mxu0 0.0
      %260 = vmatpush1.msra.mxu0 0.0
      %261 = vmatprep.subr.mxu0 0.0
      %262 = vmatpush1.msra.mxu0 0.0
      %263 = vmatprep.subr.mxu0 0.0
      %264 = vmatpush1.msra.mxu0 0.0
      %265 = vmatprep.subr.mxu0 0.0
      %266 = vmatpush1.msra.mxu0 0.0
      %267 = vmatprep.subr.mxu0 0.0
      %268 = vmatpush1.msra.mxu0 0.0
      %269 = vmatprep.subr.mxu0 0.0
      %270 = vmatpush1.msra.mxu0 0.0
      %271 = vmatprep.subr.mxu0 0.0
      %272 = vmatpush1.msra.mxu0 0.0
      %273 = vmatprep.subr.mxu0 0.0
      %274 = vmatpush1.msra.mxu0 0.0
      %275 = vmatprep.subr.mxu0 0.0
      %276 = vmatpush1.msra.mxu0 0.0
      %277 = vmatprep.subr.mxu0 0.0
      %278 = vmatpush1.msra.mxu0 0.0
      %279 = vmatprep.subr.mxu0 0.0
      %280 = vmatpush1.msra.mxu0 0.0
      %281 = vmatprep.subr.mxu0 0.0
      %282 = vmatpush1.msra.mxu0 0.0
      %283 = vmatprep.subr.mxu0 0.0
      %284 = vmatpush1.msra.mxu0 0.0
      %285 = vmatprep.subr.mxu0 0.0
      %286 = vmatpush1.msra.mxu0 0.0
      %287 = vmatprep.subr.mxu0 0.0
      %288 = vmatpush1.msra.mxu0 0.0
      %289 = vmatprep.subr.mxu0 0.0
      %290 = vmatpush1.msra.mxu0 0.0
      %291 = vmatprep.subr.mxu0 0.0
      %292 = vmatpush1.msra.mxu0 0.0
      %293 = vmatprep.subr.mxu0 0.0
      %294 = vmatpush1.msra.mxu0 0.0
      %295 = vmatprep.subr.mxu0 0.0
      %296 = vmatpush1.msra.mxu0 0.0
      %297 = vmatprep.subr.mxu0 0.0
      %298 = vmatpush1.msra.mxu0 0.0
      %299 = vmatprep.subr.mxu0 0.0
      %300 = vmatpush1.msra.mxu0 0.0
      %301 = vmatprep.subr.mxu0 0.0
      %302 = vmatpush1.msra.mxu0 0.0
      %303 = vmatprep.subr.mxu0 0.0
      %304 = vmatpush1.msra.mxu0 0.0
      %305 = vmatprep.subr.mxu0 0.0
      %306 = vmatpush1.msra.mxu0 0.0
      %307 = vmatprep.subr.mxu0 0.0
      %308 = vmatpush1.msra.mxu0 0.0
      %309 = vmatprep.subr.mxu0 0.0
      %310 = vmatpush1.msra.mxu0 0.0
      %311 = vmatprep.mubr.f32.mxu0 0.0
      %312 = vmatmul.mubr.f32.gmra.mrb[0].mxu0 %v236
      %v313 = vpop.f32.mrb[0].mxu0
      %v314 = vadd.f32 0.0, %v313
      %v315 = vpop.f32.mrb[0].mxu0
      %316 = vmatprep.mubr.f32.mxu0 0.0
      %317 = vmatmul.mubr.f32.gmra.mrb[0].mxu0 %v239
      %v318 = vpop.f32.mrb[0].mxu0
      %v319 = vadd.f32 0.0, %v318
      %v320 = vpop.f32.mrb[0].mxu0
      %321 = vmatprep.mubr.f32.mxu0 0.0
      %322 = vmatmul.mubr.f32.gmra.mrb[0].mxu0 %v242
      %v323 = vpop.f32.mrb[0].mxu0
      %v324 = vadd.f32 0.0, %v323
      %v325 = vpop.f32.mrb[0].mxu0
      %326 = vmatprep.mubr.f32.mxu0 0.0
      %327 = vmatmul.mubr.f32.gmra.mrb[0].mxu0 %v245
      %v328 = vpop.f32.mrb[0].mxu0
      %v329 = vadd.f32 0.0, %v328
      %v330 = vpop.f32.mrb[0].mxu0
      %331 = vdwg.mxu0
      %vm332 = vcmask 261120
      %333 = vst.msk [vmem:[%s214] sm:$0xff] %vm332, %v314
      %334 = vst.msk [vmem:[%s214 + $0x8] sm:$0xff] %vm332, %v319
      %335 = vst.msk [vmem:[%s214 + $0x10] sm:$0xff] %vm332, %v324
      %336 = vst.msk [vmem:[%s214 + $0x18] sm:$0xff] %vm332, %v329
      %vm337 = vcmask 269568
      %338 = vst.msk [vmem:[%s214] sm:$0xff] %vm337, 1.0
      %339 = vst.msk [vmem:[%s214 + $0x8] sm:$0xff] %vm337, 1.0
      %340 = vst.msk [vmem:[%s214 + $0x10] sm:$0xff] %vm337, 1.0
      %341 = vst.msk [vmem:[%s214 + $0x18] sm:$0xff] %vm337, 1.0
      %346 = vrot.lane.b32.xlu0 %v314, 96
      %v347 = vpop.permute.xlu0 %346
      %348 = vrot.lane.b32.xlu0 %v319, 96
      %v349 = vpop.permute.xlu0 %348
      %350 = vrot.lane.b32.xlu0 %v324, 96
      %v351 = vpop.permute.xlu0 %350
      %352 = vrot.lane.b32.xlu0 %v329, 96
      %v353 = vpop.permute.xlu0 %352
      %vm358 = vcmask 15360
      %359 = vst.msk [vmem:[%s220] sm:$0xff] %vm358, %v347
      %360 = vst.msk [vmem:[%s220 + $0x8] sm:$0xff] %vm358, %v349
      %361 = vst.msk [vmem:[%s220 + $0x10] sm:$0xff] %vm358, %v351
      %362 = vst.msk [vmem:[%s220 + $0x18] sm:$0xff] %vm358, %v353
      %363 = vrot.lane.b32.xlu0 %v314, 94
      %v364 = vpop.permute.xlu0 %363
      %365 = vrot.lane.b32.xlu0 %v319, 94
      %v366 = vpop.permute.xlu0 %365
      %367 = vrot.lane.b32.xlu0 %v324, 94
      %v368 = vpop.permute.xlu0 %367
      %369 = vrot.lane.b32.xlu0 %v329, 94
      %v370 = vpop.permute.xlu0 %369
      %375 = vst.msk [vmem:[%s226] sm:$0xff] %vm358, %v364
      %376 = vst.msk [vmem:[%s226 + $0x8] sm:$0xff] %vm358, %v366
      %377 = vst.msk [vmem:[%s226 + $0x10] sm:$0xff] %vm358, %v368
      %378 = vst.msk [vmem:[%s226 + $0x18] sm:$0xff] %vm358, %v370
      %s379 = smul.u32 4, %s16
      %p380 = scmp.lt.s32.totalorder %s379, 7
      %s381 = scalar_select %p380, %s379, 7
      %s382 = smul.addr %s381, 8
      %s383 = scalar_lea.vmem %s2, %s382
      %s384 = smul.u32 4, %s16
      %p385 = scmp.lt.s32.totalorder %s384, 7
      %s386 = scalar_select %p385, %s384, 7
      %s387 = smul.addr %s386, 8
      %s388 = scalar_lea.vmem %s3, %s387
      %s389 = smul.u32 4, %s16
      %p390 = scmp.lt.s32.totalorder %s389, 7
      %s391 = scalar_select %p390, %s389, 7
      %s392 = smul.addr %s391, 8
      %s393 = scalar_lea.vmem %s4, %s392
      // Predicated region
      $region29: #{tpu_custom_call.1} parent=27 // pred_check
        %p394 = pneg %p81
      $region30: #{tpu_custom_call.1} parent=27 // pred_check_branch
        %396 = sbr.rel (%p394) target = $region32
      $region31: #{tpu_custom_call.1} parent=27 // pred_region
        %s397 = smul.u32 4, %s16
      $region32: #{tpu_custom_call.1} parent=27 // pred_fallthru
        _
      // Predicated region
      $region33: #{tpu_custom_call.1} parent=27 // pred_check
        %p398 = pneg %p107
      $region34: #{tpu_custom_call.1} parent=27 // pred_check_branch
        %400 = sbr.rel (%p398) target = $region36
      $region35: #{tpu_custom_call.1} parent=27 // pred_region
        %s401 = smul.u32 4, %s16
      $region36: #{tpu_custom_call.1} parent=27 // pred_fallthru
        _
      // Predicated region
      $region37: #{tpu_custom_call.1} parent=27 // pred_check
        %p402 = pneg %p133
      $region38: #{tpu_custom_call.1} parent=27 // pred_check_branch
        %404 = sbr.rel (%p402) target = $region40
      $region39: #{tpu_custom_call.1} parent=27 // pred_region
        %s405 = smul.u32 4, %s16
      $region40: #{tpu_custom_call.1} parent=27 // pred_fallthru
        _
    $region28: #{tpu_custom_call.1} parent=5 // pred_fallthru
      _
    %p406 = scmp.le.s32.totalorder 2, %s11
    // Predicated region
    $region41: #{tpu_custom_call.1} parent=5 // pred_check
      %p407 = pneg %p406
    $region42: #{tpu_custom_call.1} parent=5 // pred_check_branch
      %409 = sbr.rel (%p407) target = $region44
    $region43: #{tpu_custom_call.1} parent=5 // pred_region
      %s410 = ssub.s32 %s11, 2
      // Predicated region
      $region45: #{tpu_custom_call.1} parent=43 // pred_check
        %p411 = pneg %p87
      $region46: #{tpu_custom_call.1} parent=43 // pred_check_branch
        %413 = sbr.rel (%p411) target = $region48
      $region47: #{tpu_custom_call.1} parent=43 // pred_region
        %s414 = smul.u32 4, %s17
        %p415 = scmp.lt.s32.totalorder %s414, 7
        %s416 = scalar_select %p415, %s414, 7
        %s417 = smul.addr %s416, 8
        %s418 = scalar_lea.vmem %s2, %s417
      $region48: #{tpu_custom_call.1} parent=43 // pred_fallthru
        _
      // Predicated region
      $region49: #{tpu_custom_call.1} parent=43 // pred_check
        %p419 = pneg %p113
      $region50: #{tpu_custom_call.1} parent=43 // pred_check_branch
        %421 = sbr.rel (%p419) target = $region52
      $region51: #{tpu_custom_call.1} parent=43 // pred_region
        %s422 = smul.u32 4, %s17
        %p423 = scmp.lt.s32.totalorder %s422, 7
        %s424 = scalar_select %p423, %s422, 7
        %s425 = smul.addr %s424, 8
        %s426 = scalar_lea.vmem %s3, %s425
      $region52: #{tpu_custom_call.1} parent=43 // pred_fallthru
        _
      // Predicated region
      $region53: #{tpu_custom_call.1} parent=43 // pred_check
        %p427 = pneg %p139
      $region54: #{tpu_custom_call.1} parent=43 // pred_check_branch
        %429 = sbr.rel (%p427) target = $region56
      $region55: #{tpu_custom_call.1} parent=43 // pred_region
        %s430 = smul.u32 4, %s17
        %p431 = scmp.lt.s32.totalorder %s430, 7
        %s432 = scalar_select %p431, %s430, 7
        %s433 = smul.addr %s432, 8
        %s434 = scalar_lea.vmem %s4, %s433
      $region56: #{tpu_custom_call.1} parent=43 // pred_fallthru
        _
    $region44: #{tpu_custom_call.1} parent=5 // pred_fallthru
      _
  $region6: #{tpu_custom_call.1} parent=0 // loop_footer
    %s15 = sadd.s32 1, %s11
  $region7: #{tpu_custom_call.1} parent=0 // loop_footer_branch
    %10 = sbr.rel target = $region3
  $region8: #{tpu_custom_call.1} parent=0 // loop_exit
    _

</llo_original>
